<compile_context>
chip_gen: v6e
topology: v6e:2x2x1
jax: 0.10.0
libtpu: 0.0.40
codegen_flags: <defaults>
</compile_context>

<pallas_src>
import jax
import jax.numpy as jnp
from jax.experimental import pallas as pl
from jax.experimental.pallas import tpu as pltpu


def upsample_kernel(x_ref, w0_ref, w1_ref, b_ref, e0_ref, e1_ref, o_ref):
    # x_ref : (C_in, TL)      input tile, NCL layout (length on lanes)
    # wk_ref: (C_out, C_in)   transposed weight for kernel tap k
    # b_ref : (C_out, 1)      bias, f32 (broadcast over lanes)
    # ek_ref: (TL, 2*TL)      0/1 scatter matrix: E_k[l, 2*l + k] = 1
    # o_ref : (C_out, 2*TL)   output tile, NCL layout (length on lanes)
    x = x_ref[...]
    z0 = jnp.dot(w0_ref[...], x, preferred_element_type=jnp.float32)  # (C_out, TL)
    z1 = jnp.dot(w1_ref[...], x, preferred_element_type=jnp.float32)  # (C_out, TL)
    # Fused stride-2 interleave: even output lanes <- z0, odd output lanes <- z1.
    y = (jnp.dot(z0, e0_ref[...], preferred_element_type=jnp.float32)
         + jnp.dot(z1, e1_ref[...], preferred_element_type=jnp.float32))
    o_ref[...] = (y + b_ref[...]).astype(o_ref.dtype)


def _choose_length_tile(L: int) -> int:
    # Lane-dense tiles (multiples of 128) when possible.  Capped at 256 so each
    # (TL, 2*TL) f32 scatter matrix is ~0.5 MiB (fits scoped VMEM everywhere,
    # even double-buffered).
    for t in (256, 128):
        if L % t == 0:
            return t
    return L  # small / odd lengths: a single tile along L


def upsample_conv_transpose1d(x_ncl, weight, bias):
    """x_ncl: (N, C_in, L); weight: (C_in, C_out, 2); bias: (C_out,)
    Returns (N, C_out, 2*L), matching nn.ConvTranspose1d(k=2, stride=2)."""
    N, C_in, L = x_ncl.shape
    C_out = weight.shape[1]
    TL = _choose_length_tile(L)
    n_l = L // TL

    # Tiny parameter re-packs (done once, outside the hot path).
    w0 = jnp.transpose(weight[:, :, 0]).astype(x_ncl.dtype)   # (C_out, C_in), k = 0
    w1 = jnp.transpose(weight[:, :, 1]).astype(x_ncl.dtype)   # (C_out, C_in), k = 1
    b2 = bias.astype(jnp.float32).reshape(C_out, 1)           # (C_out, 1)

    # Exact 0/1 lane-scatter matrices: E_k[l, 2*l + k] = 1.
    l_idx = jnp.arange(TL, dtype=jnp.int32)[:, None]
    m_idx = jnp.arange(2 * TL, dtype=jnp.int32)[None, :]
    e0 = (m_idx == 2 * l_idx).astype(jnp.float32)             # (TL, 2*TL)
    e1 = (m_idx == 2 * l_idx + 1).astype(jnp.float32)         # (TL, 2*TL)

    return pl.pallas_call(
        upsample_kernel,
        out_shape=jax.ShapeDtypeStruct((N, C_out, 2 * L), x_ncl.dtype),
        grid=(N, n_l),
        in_specs=[
            # Leading batch dim squeezed (None) -> kernel sees clean 2-D refs.
            pl.BlockSpec((None, C_in, TL), lambda n, j: (n, 0, j)),
            pl.BlockSpec((C_out, C_in), lambda n, j: (0, 0)),
            pl.BlockSpec((C_out, C_in), lambda n, j: (0, 0)),
            pl.BlockSpec((C_out, 1), lambda n, j: (0, 0)),
            pl.BlockSpec((TL, 2 * TL), lambda n, j: (0, 0)),
            pl.BlockSpec((TL, 2 * TL), lambda n, j: (0, 0)),
        ],
        out_specs=pl.BlockSpec((None, C_out, 2 * TL), lambda n, j: (n, 0, j)),
        compiler_params=pltpu.CompilerParams(
            dimension_semantics=("parallel", "parallel"),
            vmem_limit_bytes=32 * 1024 * 1024,
        ),
    )(x_ncl, w0, w1, b2, e0, e1)


def _reference(x_ncl, weight, bias):
    # Pure-JAX reference of ConvTranspose1d(k=2, stride=2):
    # out[n, co, 2l+k] = sum_ci x[n,ci,l] * W[ci,co,k] + b[co]
    y = jnp.einsum("ncl,cok->nlko", x_ncl, weight)
    N, L, K, C_out = y.shape
    y = y.reshape(N, L * K, C_out) + bias[None, None, :]
    return jnp.transpose(y, (0, 2, 1))


if __name__ == "__main__":
    key = jax.random.PRNGKey(0)
    k_x, k_w, k_b = jax.random.split(key, 3)

    N, C_in, C_out, L = 2, 4, 8, 16

    x = jax.random.normal(k_x, (N, C_in, L), dtype=jnp.float32)
    # Deterministic param init (shapes match nn.ConvTranspose1d(C_in, C_out, 2)).
    bound = 1.0 / (C_in * 2) ** 0.5
    weight = jax.random.uniform(k_w, (C_in, C_out, 2), jnp.float32, -bound, bound)
    bias = jax.random.uniform(k_b, (C_out,), jnp.float32, -bound, bound)

    out = upsample_conv_transpose1d(x, weight, bias)
    out = jax.block_until_ready(out)

    ref = _reference(x, weight, bias)
    assert out.shape == (N, C_out, 2 * L)
    assert jnp.allclose(out, ref, atol=1e-5, rtol=1e-5)

    print("KERNEL_OK")
</pallas_src>

<mosaic_0001>
module attributes {stable_mosaic.version = 11 : i64} {
  func.func @upsample_kernel(%arg0: i32, %arg1: i32, %arg2: memref<1x4x16xf32, #tpu.memory_space<vmem>>, %arg3: memref<8x4xf32, #tpu.memory_space<vmem>>, %arg4: memref<8x4xf32, #tpu.memory_space<vmem>>, %arg5: memref<8x1xf32, #tpu.memory_space<vmem>>, %arg6: memref<16x32xf32, #tpu.memory_space<vmem>>, %arg7: memref<16x32xf32, #tpu.memory_space<vmem>>, %arg8: memref<1x8x32xf32, #tpu.memory_space<vmem>>) attributes {dimension_semantics = [#tpu.dimension_semantics<parallel>, #tpu.dimension_semantics<parallel>], iteration_bounds = array<i64: 2, 1>, scalar_prefetch = 0 : i64, scratch_operands = 0 : i64, tpu.core_type = #tpu.core_type<tc>, window_params = [{transform_indices = @transform_0, window_bounds = array<i64: 1, 4, 16>}, {pipeline_mode = #tpu.pipeline_mode<synchronous>, transform_indices = @transform_1, window_bounds = array<i64: 8, 4>}, {pipeline_mode = #tpu.pipeline_mode<synchronous>, transform_indices = @transform_2, window_bounds = array<i64: 8, 4>}, {pipeline_mode = #tpu.pipeline_mode<synchronous>, transform_indices = @transform_3, window_bounds = array<i64: 8, 1>}, {pipeline_mode = #tpu.pipeline_mode<synchronous>, transform_indices = @transform_4, window_bounds = array<i64: 16, 32>}, {pipeline_mode = #tpu.pipeline_mode<synchronous>, transform_indices = @transform_5, window_bounds = array<i64: 16, 32>}, {transform_indices = @transform_6, window_bounds = array<i64: 1, 8, 32>}]} {
    %c0 = arith.constant 0 : index
    %c0_0 = arith.constant 0 : index
    %c0_1 = arith.constant 0 : index
    %0 = vector.load %arg2[%c0, %c0_0, %c0_1] : memref<1x4x16xf32, #tpu.memory_space<vmem>>, vector<1x4x16xf32>
    %1 = vector.shape_cast %0 : vector<1x4x16xf32> to vector<4x16xf32>
    %c0_2 = arith.constant 0 : index
    %c0_3 = arith.constant 0 : index
    %2 = vector.load %arg3[%c0_2, %c0_3] : memref<8x4xf32, #tpu.memory_space<vmem>>, vector<8x4xf32>
    %cst = arith.constant dense<0.000000e+00> : vector<8x16xf32>
    %3 = tpu.matmul %2, %1, %cst {dimension_numbers = #tpu.dot_dimension_numbers<[1], [0], [0], [1], [0, 0, 1, 1], [], []>} : vector<8x4xf32>, vector<4x16xf32>, vector<8x16xf32> -> vector<8x16xf32>
    %c0_4 = arith.constant 0 : index
    %c0_5 = arith.constant 0 : index
    %4 = vector.load %arg4[%c0_4, %c0_5] : memref<8x4xf32, #tpu.memory_space<vmem>>, vector<8x4xf32>
    %cst_6 = arith.constant dense<0.000000e+00> : vector<8x16xf32>
    %5 = tpu.matmul %4, %1, %cst_6 {dimension_numbers = #tpu.dot_dimension_numbers<[1], [0], [0], [1], [0, 0, 1, 1], [], []>} : vector<8x4xf32>, vector<4x16xf32>, vector<8x16xf32> -> vector<8x16xf32>
    %c0_7 = arith.constant 0 : index
    %c0_8 = arith.constant 0 : index
    %6 = vector.load %arg6[%c0_7, %c0_8] : memref<16x32xf32, #tpu.memory_space<vmem>>, vector<16x32xf32>
    %cst_9 = arith.constant dense<0.000000e+00> : vector<8x32xf32>
    %7 = tpu.matmul %3, %6, %cst_9 {dimension_numbers = #tpu.dot_dimension_numbers<[1], [0], [0], [1], [0, 0, 1, 1], [], []>} : vector<8x16xf32>, vector<16x32xf32>, vector<8x32xf32> -> vector<8x32xf32>
    %c0_10 = arith.constant 0 : index
    %c0_11 = arith.constant 0 : index
    %8 = vector.load %arg7[%c0_10, %c0_11] : memref<16x32xf32, #tpu.memory_space<vmem>>, vector<16x32xf32>
    %cst_12 = arith.constant dense<0.000000e+00> : vector<8x32xf32>
    %9 = tpu.matmul %5, %8, %cst_12 {dimension_numbers = #tpu.dot_dimension_numbers<[1], [0], [0], [1], [0, 0, 1, 1], [], []>} : vector<8x16xf32>, vector<16x32xf32>, vector<8x32xf32> -> vector<8x32xf32>
    %10 = arith.addf %7, %9 : vector<8x32xf32>
    %c0_13 = arith.constant 0 : index
    %c0_14 = arith.constant 0 : index
    %11 = vector.load %arg5[%c0_13, %c0_14] : memref<8x1xf32, #tpu.memory_space<vmem>>, vector<8x1xf32>
    %12 = vector.broadcast %11 : vector<8x1xf32> to vector<8x32xf32>
    %13 = arith.addf %10, %12 : vector<8x32xf32>
    %c0_15 = arith.constant 0 : index
    %c0_16 = arith.constant 0 : index
    %c0_17 = arith.constant 0 : index
    %14 = vector.load %arg8[%c0_15, %c0_16, %c0_17] : memref<1x8x32xf32, #tpu.memory_space<vmem>>, vector<1x8x32xf32>
    %15 = vector.shape_cast %14 : vector<1x8x32xf32> to vector<8x32xf32>
    %16 = vector.shape_cast %13 : vector<8x32xf32> to vector<1x8x32xf32>
    tpu.vector_store %arg8[%c0_15, %c0_16, %c0_17], %16 {strides = array<i32>} : memref<1x8x32xf32, #tpu.memory_space<vmem>>, vector<1x8x32xf32>,
    return
  }
  func.func @transform_0(%arg0: i32, %arg1: i32) -> (i32, i32, i32) {
    %c0_i32 = arith.constant 0 : i32
    %c0_i32_0 = arith.constant 0 : i32
    return %arg0, %c0_i32, %arg1 : i32, i32, i32
  }
  func.func @transform_1(%arg0: i32, %arg1: i32) -> (i32, i32) {
    %c0_i32 = arith.constant 0 : i32
    %c0_i32_0 = arith.constant 0 : i32
    %c0_i32_1 = arith.constant 0 : i32
    return %c0_i32, %c0_i32_0 : i32, i32
  }
  func.func @transform_2(%arg0: i32, %arg1: i32) -> (i32, i32) {
    %c0_i32 = arith.constant 0 : i32
    %c0_i32_0 = arith.constant 0 : i32
    %c0_i32_1 = arith.constant 0 : i32
    return %c0_i32, %c0_i32_0 : i32, i32
  }
  func.func @transform_3(%arg0: i32, %arg1: i32) -> (i32, i32) {
    %c0_i32 = arith.constant 0 : i32
    %c0_i32_0 = arith.constant 0 : i32
    %c0_i32_1 = arith.constant 0 : i32
    return %c0_i32, %c0_i32_0 : i32, i32
  }
  func.func @transform_4(%arg0: i32, %arg1: i32) -> (i32, i32) {
    %c0_i32 = arith.constant 0 : i32
    %c0_i32_0 = arith.constant 0 : i32
    %c0_i32_1 = arith.constant 0 : i32
    return %c0_i32, %c0_i32_0 : i32, i32
  }
  func.func @transform_5(%arg0: i32, %arg1: i32) -> (i32, i32) {
    %c0_i32 = arith.constant 0 : i32
    %c0_i32_0 = arith.constant 0 : i32
    %c0_i32_1 = arith.constant 0 : i32
    return %c0_i32, %c0_i32_0 : i32, i32
  }
  func.func @transform_6(%arg0: i32, %arg1: i32) -> (i32, i32, i32) {
    %c0_i32 = arith.constant 0 : i32
    %c0_i32_0 = arith.constant 0 : i32
    return %arg0, %c0_i32, %arg1 : i32, i32, i32
  }
}

</mosaic_0001>

<llo_original>
// kernel: tpu_custom_call.1
$region0: #{tpu_custom_call.1}
  #allocation0 [shape = 'u32[]', space=smem, size = 0x4, offset = 0x4, fixed_abs, tag = 'smem constant byte address 0x4 - core index']
  #allocation1 [shape = 'u32[144,128]{1,0:T(1,128)}', space=vmem, size = 0x12000, scoped, tag = 'internal scratch']
  %s0 = inlined_call_operand.hbm [shape: f32[2,4,16], index: 0, kind: input, shape index: {}]
  %s1 = inlined_call_operand.vmem [shape: f32[8,4], index: 1, kind: input, shape index: {}]
  %s2 = inlined_call_operand.vmem [shape: f32[8,4], index: 2, kind: input, shape index: {}]
  %s3 = inlined_call_operand.vmem [shape: f32[8,1], index: 3, kind: input, shape index: {}]
  %s4 = inlined_call_operand.vmem [shape: f32[16,32], index: 4, kind: input, shape index: {}]
  %s5 = inlined_call_operand.vmem [shape: f32[16,32], index: 5, kind: input, shape index: {}]
  %s6 = inlined_call_operand.hbm [shape: f32[2,8,32], index: 6, kind: output, shape index: {}]
  %s7 = sld [smem:[#allocation0]]
  $region61: #{tpu_custom_call.1} parent=0
    _
  %s9 = ssub.s32 1, %s7
  %s10 = scalar_select 0, %s9, %s7
  $region1: #{tpu_custom_call.1} parent=0
    #allocation2 [shape = 'u8[4096]{0}', space=vmem, size = 0x1000, scoped, tag = 'input window, operand 0']
    #allocation3 [shape = 's32[2]{0}', space=sflag, size = 0x8, scoped, tag = 'scoped memory for tpu_custom_call.1']
    #allocation4 [shape = 's32[2]{0}', space=sflag, size = 0x8, scoped, tag = 'scoped memory for tpu_custom_call.1']
    #allocation5 [shape = 'u8[8192]{0}', space=vmem, size = 0x2000, scoped, tag = 'output window, operand 0']
    %11 = vsyncpa [#allocation3], 0
    %s12 = scalar_lea.sflag [#allocation3], 1
    %13 = vsyncpa %s12, 0
    %14 = vsyncpa [#allocation4], 0
    %s15 = scalar_lea.sflag [#allocation4], 1
    %16 = vsyncpa %s15, 0
    loop: start=0, step=1, limit=4
    $region2: #{tpu_custom_call.1} parent=1 // loop_pre_header
      _
    $region3: #{tpu_custom_call.1} parent=1 // loop_header
      %s18 = sphi 0, %s22
      %p19 = scmp.ge.s32.totalorder %s18, 4
      %s25 = sphi 0, %s37
      %s26 = sphi 0, %s33
      %s27 = sphi 0, %s25
      %s28 = sphi 0, %s26
      %s29 = sphi 0, %s27
      %s30 = sphi 0, %s28
      %s42 = sphi 0, %s44
      %s45 = sphi 0, %s42
      %s46 = sphi 0, %s45
      %s62 = sphi 0, %s46
      %s66 = sphi 0, %s66
      %s68 = sphi 0, %s66
      %s69 = sphi 0, %s68
      %s83 = sphi 0, %s69
      %s87 = sphi 0, %s87
      %s89 = sphi 0, %s87
      %s90 = sphi 0, %s89
      %s104 = sphi 0, %s90
      %s108 = sphi 0, %s108
      %s110 = sphi 0, %s108
      %s111 = sphi 0, %s110
      %s125 = sphi 0, %s111
      %s129 = sphi 0, %s129
      %s131 = sphi 0, %s129
      %s132 = sphi 0, %s131
      %s146 = sphi 0, %s132
      %s150 = sphi 0, %s150
      %s152 = sphi 0, %s150
      %s153 = sphi 0, %s152
      %s167 = sphi 0, %s153
      %s175 = sphi 0, %s177
      %s178 = sphi 0, %s175
      %s179 = sphi 0, %s178
      %s195 = sphi 0, %s179
    $region4: #{tpu_custom_call.1} parent=1 // loop_header_branch
      %21 = sbr.rel (%p19) target = $region8
    $region5: #{tpu_custom_call.1} parent=1 // loop_body
      %s23 = ssub.s32 %s18, 1
      %s24 = ssub.s32 %s18, 2
      %s31 = sadd.s32 1, %s26
      %p32 = scmp.ge.s32.totalorder %s31, 1
      %s33 = scalar_select %p32, 0, %s31
      %s34 = sadd.s32 1, %s25
      %s35 = scalar_select %p32, %s34, %s25
      %p36 = scmp.ge.s32.totalorder %s35, 2
      %s37 = scalar_select %p36, 0, %s35
      %s38 = ssub.s32 %s25, %s37
      %s39 = ssub.s32 %s26, %s33
      %s40 = sor.u32 %s38, %s39
      %p41 = scmp.eq.s32.totalorder %s40, 0
      %s43 = sadd.s32 %s42, 1
      %s44 = scalar_select %p41, %s42, %s43
      %p47 = pneg %p41
      %p48 = scmp.eq.s32.totalorder %s18, 1
      %p49 = por %p47, %p48
      %p50 = scmp.ne.s32.totalorder %s42, %s45
      %p51 = scmp.eq.s32.totalorder %s18, 0
      %p52 = por %p50, %p51
      %p53 = scmp.ne.s32.totalorder %s42, %s45
      %p54 = scmp.eq.s32.totalorder %s23, 1
      %p55 = por %p53, %p54
      %p56 = scmp.ne.s32.totalorder %s45, %s46
      %p57 = scmp.eq.s32.totalorder %s23, 0
      %p58 = por %p56, %p57
      %p59 = scmp.ne.s32.totalorder %s45, %s46
      %p60 = scmp.eq.s32.totalorder %s24, 1
      %p61 = por %p59, %p60
      %p63 = scmp.ne.s32.totalorder %s46, %s62
      %p64 = scmp.eq.s32.totalorder %s24, 0
      %p65 = por %p63, %p64
      %s67 = sadd.s32 %s66, 1
      %p70 = scmp.eq.s32.totalorder %s18, 1
      %p71 = scmp.ne.s32.totalorder %s66, %s68
      %p72 = scmp.eq.s32.totalorder %s18, 0
      %p73 = por %p71, %p72
      %p74 = scmp.ne.s32.totalorder %s66, %s68
      %p75 = scmp.eq.s32.totalorder %s23, 1
      %p76 = por %p74, %p75
      %p77 = scmp.ne.s32.totalorder %s68, %s69
      %p78 = scmp.eq.s32.totalorder %s23, 0
      %p79 = por %p77, %p78
      %p80 = scmp.ne.s32.totalorder %s68, %s69
      %p81 = scmp.eq.s32.totalorder %s24, 1
      %p82 = por %p80, %p81
      %p84 = scmp.ne.s32.totalorder %s69, %s83
      %p85 = scmp.eq.s32.totalorder %s24, 0
      %p86 = por %p84, %p85
      %s88 = sadd.s32 %s87, 1
      %p91 = scmp.eq.s32.totalorder %s18, 1
      %p92 = scmp.ne.s32.totalorder %s87, %s89
      %p93 = scmp.eq.s32.totalorder %s18, 0
      %p94 = por %p92, %p93
      %p95 = scmp.ne.s32.totalorder %s87, %s89
      %p96 = scmp.eq.s32.totalorder %s23, 1
      %p97 = por %p95, %p96
      %p98 = scmp.ne.s32.totalorder %s89, %s90
      %p99 = scmp.eq.s32.totalorder %s23, 0
      %p100 = por %p98, %p99
      %p101 = scmp.ne.s32.totalorder %s89, %s90
      %p102 = scmp.eq.s32.totalorder %s24, 1
      %p103 = por %p101, %p102
      %p105 = scmp.ne.s32.totalorder %s90, %s104
      %p106 = scmp.eq.s32.totalorder %s24, 0
      %p107 = por %p105, %p106
      %s109 = sadd.s32 %s108, 1
      %p112 = scmp.eq.s32.totalorder %s18, 1
      %p113 = scmp.ne.s32.totalorder %s108, %s110
      %p114 = scmp.eq.s32.totalorder %s18, 0
      %p115 = por %p113, %p114
      %p116 = scmp.ne.s32.totalorder %s108, %s110
      %p117 = scmp.eq.s32.totalorder %s23, 1
      %p118 = por %p116, %p117
      %p119 = scmp.ne.s32.totalorder %s110, %s111
      %p120 = scmp.eq.s32.totalorder %s23, 0
      %p121 = por %p119, %p120
      %p122 = scmp.ne.s32.totalorder %s110, %s111
      %p123 = scmp.eq.s32.totalorder %s24, 1
      %p124 = por %p122, %p123
      %p126 = scmp.ne.s32.totalorder %s111, %s125
      %p127 = scmp.eq.s32.totalorder %s24, 0
      %p128 = por %p126, %p127
      %s130 = sadd.s32 %s129, 1
      %p133 = scmp.eq.s32.totalorder %s18, 1
      %p134 = scmp.ne.s32.totalorder %s129, %s131
      %p135 = scmp.eq.s32.totalorder %s18, 0
      %p136 = por %p134, %p135
      %p137 = scmp.ne.s32.totalorder %s129, %s131
      %p138 = scmp.eq.s32.totalorder %s23, 1
      %p139 = por %p137, %p138
      %p140 = scmp.ne.s32.totalorder %s131, %s132
      %p141 = scmp.eq.s32.totalorder %s23, 0
      %p142 = por %p140, %p141
      %p143 = scmp.ne.s32.totalorder %s131, %s132
      %p144 = scmp.eq.s32.totalorder %s24, 1
      %p145 = por %p143, %p144
      %p147 = scmp.ne.s32.totalorder %s132, %s146
      %p148 = scmp.eq.s32.totalorder %s24, 0
      %p149 = por %p147, %p148
      %s151 = sadd.s32 %s150, 1
      %p154 = scmp.eq.s32.totalorder %s18, 1
      %p155 = scmp.ne.s32.totalorder %s150, %s152
      %p156 = scmp.eq.s32.totalorder %s18, 0
      %p157 = por %p155, %p156
      %p158 = scmp.ne.s32.totalorder %s150, %s152
      %p159 = scmp.eq.s32.totalorder %s23, 1
      %p160 = por %p158, %p159
      %p161 = scmp.ne.s32.totalorder %s152, %s153
      %p162 = scmp.eq.s32.totalorder %s23, 0
      %p163 = por %p161, %p162
      %p164 = scmp.ne.s32.totalorder %s152, %s153
      %p165 = scmp.eq.s32.totalorder %s24, 1
      %p166 = por %p164, %p165
      %p168 = scmp.ne.s32.totalorder %s153, %s167
      %p169 = scmp.eq.s32.totalorder %s24, 0
      %p170 = por %p168, %p169
      %s171 = ssub.s32 %s25, %s37
      %s172 = ssub.s32 %s26, %s33
      %s173 = sor.u32 %s171, %s172
      %p174 = scmp.eq.s32.totalorder %s173, 0
      %s176 = sadd.s32 %s175, 1
      %s177 = scalar_select %p174, %s175, %s176
      %p180 = pneg %p174
      %p181 = scmp.eq.s32.totalorder %s18, 1
      %p182 = por %p180, %p181
      %p183 = scmp.ne.s32.totalorder %s175, %s178
      %p184 = scmp.eq.s32.totalorder %s18, 0
      %p185 = por %p183, %p184
      %p186 = scmp.ne.s32.totalorder %s175, %s178
      %p187 = scmp.eq.s32.totalorder %s23, 1
      %p188 = por %p186, %p187
      %p189 = scmp.ne.s32.totalorder %s178, %s179
      %p190 = scmp.eq.s32.totalorder %s23, 0
      %p191 = por %p189, %p190
      %p192 = scmp.ne.s32.totalorder %s178, %s179
      %p193 = scmp.eq.s32.totalorder %s24, 1
      %p194 = por %p192, %p193
      %p196 = scmp.ne.s32.totalorder %s179, %s195
      %p197 = scmp.eq.s32.totalorder %s24, 0
      %p198 = por %p196, %p197
      %p199 = scmp.le.s32.totalorder 1, %s18
      %p200 = scmp.lt.s32.totalorder %s18, 3
      %p201 = pnand %p199, %p200
      %p202 = pneg %p201
      // Predicated region
      $region9: #{tpu_custom_call.1} parent=5 // pred_check
        _
      $region10: #{tpu_custom_call.1} parent=5 // pred_check_branch
        %204 = sbr.rel (%p201) target = $region12
      $region11: #{tpu_custom_call.1} parent=5 // pred_region
        %s205 = ssub.s32 %s18, 1
        // Predicated region
        $region13: #{tpu_custom_call.1} parent=11 // pred_check
          %p206 = pneg %p79
        $region14: #{tpu_custom_call.1} parent=11 // pred_check_branch
          %208 = sbr.rel (%p206) target = $region16
        $region15: #{tpu_custom_call.1} parent=11 // pred_region
          _
        $region16: #{tpu_custom_call.1} parent=11 // pred_fallthru
          _
        // Predicated region
        $region17: #{tpu_custom_call.1} parent=11 // pred_check
          %p209 = pneg %p100
        $region18: #{tpu_custom_call.1} parent=11 // pred_check_branch
          %211 = sbr.rel (%p209) target = $region20
        $region19: #{tpu_custom_call.1} parent=11 // pred_region
          _
        $region20: #{tpu_custom_call.1} parent=11 // pred_fallthru
          _
        // Predicated region
        $region21: #{tpu_custom_call.1} parent=11 // pred_check
          %p212 = pneg %p121
        $region22: #{tpu_custom_call.1} parent=11 // pred_check_branch
          %214 = sbr.rel (%p212) target = $region24
        $region23: #{tpu_custom_call.1} parent=11 // pred_region
          _
        $region24: #{tpu_custom_call.1} parent=11 // pred_fallthru
          _
        // Predicated region
        $region25: #{tpu_custom_call.1} parent=11 // pred_check
          %p215 = pneg %p142
        $region26: #{tpu_custom_call.1} parent=11 // pred_check_branch
          %217 = sbr.rel (%p215) target = $region28
        $region27: #{tpu_custom_call.1} parent=11 // pred_region
          _
        $region28: #{tpu_custom_call.1} parent=11 // pred_fallthru
          _
        // Predicated region
        $region29: #{tpu_custom_call.1} parent=11 // pred_check
          %p218 = pneg %p163
        $region30: #{tpu_custom_call.1} parent=11 // pred_check_branch
          %220 = sbr.rel (%p218) target = $region32
        $region31: #{tpu_custom_call.1} parent=11 // pred_region
          _
        $region32: #{tpu_custom_call.1} parent=11 // pred_fallthru
          _
      $region12: #{tpu_custom_call.1} parent=5 // pred_fallthru
        _
      %p221 = scmp.lt.s32.totalorder %s18, 2
      // Predicated region
      $region33: #{tpu_custom_call.1} parent=5 // pred_check
        %p222 = pneg %p221
      $region34: #{tpu_custom_call.1} parent=5 // pred_check_branch
        %224 = sbr.rel (%p222) target = $region36
      $region35: #{tpu_custom_call.1} parent=5 // pred_region
        // Predicated region
        $region37: #{tpu_custom_call.1} parent=35 // pred_check
          %p225 = pneg %p52
        $region38: #{tpu_custom_call.1} parent=35 // pred_check_branch
          %227 = sbr.rel (%p225) target = $region40
        $region39: #{tpu_custom_call.1} parent=35 // pred_region
          %s228 = sand.u32 %s42, 1
          %s229 = scalar_lea.sflag [#allocation3], %s228
          %s230 = sand.u32 %s42, 1
          %s231 = smul.addr %s230, 4
          %s232 = scalar_lea.vmem [#allocation2], %s231
          %s234 = ssub.s32 64, 64
          %235 = vsyncadd %s229, %s234
          %s236 = sadd.s32 %s26, %s25
          %s237 = smul.addr %s236, 64
          %s238 = scalar_lea.hbm %s0, %s237
          %s240 = sshll.u32 %s232, 4
          %s241 = int_to_ptr.vmem [resolvable:$true] %s240
          %243 = dma.hbm_to_vmem [thread:$0]  %s238, 64, %s241, %s229
        $region40: #{tpu_custom_call.1} parent=35 // pred_fallthru
          _
      $region36: #{tpu_custom_call.1} parent=5 // pred_fallthru
        _
      %p244 = scmp.le.s32.totalorder 1, %s18
      %p245 = scmp.lt.s32.totalorder %s18, 3
      %p246 = pnand %p244, %p245
      %p247 = pneg %p246
      // Predicated region
      $region41: #{tpu_custom_call.1} parent=5 // pred_check
        _
      $region42: #{tpu_custom_call.1} parent=5 // pred_check_branch
        %249 = sbr.rel (%p246) target = $region44
      $region43: #{tpu_custom_call.1} parent=5 // pred_region
        %s250 = ssub.s32 %s18, 1
        %s251 = sand.u32 %s45, 1
        %s252 = scalar_lea.sflag [#allocation3], %s251
        %s253 = sand.u32 %s45, 1
        %s254 = smul.addr %s253, 4
        %s255 = scalar_lea.vmem [#allocation2], %s254
        // Predicated region
        $region45: #{tpu_custom_call.1} parent=43 // pred_check
          %p256 = pneg %p58
        $region46: #{tpu_custom_call.1} parent=43 // pred_check_branch
          %258 = sbr.rel (%p256) target = $region48
        $region47: #{tpu_custom_call.1} parent=43 // pred_region
          %259 = dma.done %s252, 64
        $region48: #{tpu_custom_call.1} parent=43 // pred_fallthru
          _
        %s260 = sand.u32 %s45, 1
        %s261 = scalar_lea.sflag [#allocation3], %s260
        %s262 = sand.u32 %s45, 1
        %s263 = smul.addr %s262, 4
        %s264 = scalar_lea.vmem [#allocation2], %s263
        %p265 = pneg %p58
        %p266 = pneg %p55
        %p267 = pneg %p79
        %p268 = pneg %p76
        %p269 = pneg %p100
        %p270 = pneg %p97
        %p271 = pneg %p121
        %p272 = pneg %p118
        %p273 = pneg %p142
        %p274 = pneg %p139
        %p275 = pneg %p163
        %p276 = pneg %p160
        %p277 = pneg %p191
        %p278 = pneg %p188
        %s279 = sand.u32 %s178, 1
        %s280 = scalar_lea.sflag [#allocation4], %s279
        %s281 = sand.u32 %s178, 1
        %s282 = smul.addr %s281, 8
        %s283 = scalar_lea.vmem [#allocation5], %s282
        %v284 = vld [vmem:[%s255] sm:$0xf]
        %v285 = vld [vmem:[%s1] sm:$0xff]
        %vm286 = vcmask 31744
        %v288 = vsel %vm286, %v285, 0
        %vm290 = vcmask 1043456
        %v292 = vsel %vm290, %v284, 0
        %294 = vmatprep.subr.mxu0 0.0
        %295 = vmatpush1.msra.mxu0 0.0
        %296 = vmatprep.subr.mxu0 0.0
        %297 = vmatpush1.msra.mxu0 0.0
        %298 = vmatprep.subr.mxu0 0.0
        %299 = vmatpush1.msra.mxu0 0.0
        %300 = vmatprep.subr.mxu0 0.0
        %301 = vmatpush1.msra.mxu0 0.0
        %302 = vmatprep.subr.mxu0 0.0
        %303 = vmatpush1.msra.mxu0 0.0
        %304 = vmatprep.subr.mxu0 0.0
        %305 = vmatpush1.msra.mxu0 0.0
        %306 = vmatprep.subr.mxu0 0.0
        %307 = vmatpush1.msra.mxu0 0.0
        %308 = vmatprep.subr.mxu0 0.0
        %309 = vmatpush1.msra.mxu0 0.0
        %310 = vmatprep.subr.mxu0 0.0
        %311 = vmatpush1.msra.mxu0 0.0
        %312 = vmatprep.subr.mxu0 0.0
        %313 = vmatpush1.msra.mxu0 0.0
        %314 = vmatprep.subr.mxu0 0.0
        %315 = vmatpush1.msra.mxu0 0.0
        %316 = vmatprep.subr.mxu0 0.0
        %317 = vmatpush1.msra.mxu0 0.0
        %318 = vmatprep.subr.mxu0 0.0
        %319 = vmatpush1.msra.mxu0 0.0
        %320 = vmatprep.subr.mxu0 0.0
        %321 = vmatpush1.msra.mxu0 0.0
        %322 = vmatprep.subr.mxu0 0.0
        %323 = vmatpush1.msra.mxu0 0.0
        %324 = vmatprep.subr.mxu0 0.0
        %325 = vmatpush1.msra.mxu0 %v292
        %326 = vmatprep.subr.mxu0 0.0
        %327 = vmatpush2.msra.mxu0 0.0
        %328 = vmatprep.subr.mxu0 0.0
        %329 = vmatpush2.msra.mxu0 0.0
        %330 = vmatprep.subr.mxu0 0.0
        %331 = vmatpush2.msra.mxu0 0.0
        %332 = vmatprep.subr.mxu0 0.0
        %333 = vmatpush2.msra.mxu0 0.0
        %334 = vmatprep.subr.mxu0 0.0
        %335 = vmatpush2.msra.mxu0 0.0
        %336 = vmatprep.subr.mxu0 0.0
        %337 = vmatpush2.msra.mxu0 0.0
        %338 = vmatprep.subr.mxu0 0.0
        %339 = vmatpush2.msra.mxu0 0.0
        %340 = vmatprep.subr.mxu0 0.0
        %341 = vmatpush2.msra.mxu0 0.0
        %342 = vmatprep.subr.mxu0 0.0
        %343 = vmatpush2.msra.mxu0 0.0
        %344 = vmatprep.subr.mxu0 0.0
        %345 = vmatpush2.msra.mxu0 0.0
        %346 = vmatprep.subr.mxu0 0.0
        %347 = vmatpush2.msra.mxu0 0.0
        %348 = vmatprep.subr.mxu0 0.0
        %349 = vmatpush2.msra.mxu0 0.0
        %350 = vmatprep.subr.mxu0 0.0
        %351 = vmatpush2.msra.mxu0 0.0
        %352 = vmatprep.subr.mxu0 0.0
        %353 = vmatpush2.msra.mxu0 0.0
        %354 = vmatprep.subr.mxu0 0.0
        %355 = vmatpush2.msra.mxu0 0.0
        %356 = vmatprep.subr.mxu0 0.0
        %357 = vmatpush2.msra.mxu0 0.0
        %358 = vmatprep.mubr.f32.mxu0 0.0
        %359 = vmatmul.mubr.f32.gmra.mxu0 %v288
        %v360 = vpop.f32.mrf.mxu0
        %v361 = vadd.f32 0.0, %v360
        %v362 = vpop.f32.mrf.mxu0
        %363 = vdwg.mxu0
        %v364 = vld [vmem:[%s2] sm:$0xff]
        %v366 = vsel %vm286, %v364, 0
        %368 = vmatprep.subr.mxu0 0.0
        %369 = vmatpush1.msra.mxu0 0.0
        %370 = vmatprep.subr.mxu0 0.0
        %371 = vmatpush1.msra.mxu0 0.0
        %372 = vmatprep.subr.mxu0 0.0
        %373 = vmatpush1.msra.mxu0 0.0
        %374 = vmatprep.subr.mxu0 0.0
        %375 = vmatpush1.msra.mxu0 0.0
        %376 = vmatprep.subr.mxu0 0.0
        %377 = vmatpush1.msra.mxu0 0.0
        %378 = vmatprep.subr.mxu0 0.0
        %379 = vmatpush1.msra.mxu0 0.0
        %380 = vmatprep.subr.mxu0 0.0
        %381 = vmatpush1.msra.mxu0 0.0
        %382 = vmatprep.subr.mxu0 0.0
        %383 = vmatpush1.msra.mxu0 0.0
        %384 = vmatprep.subr.mxu0 0.0
        %385 = vmatpush1.msra.mxu0 0.0
        %386 = vmatprep.subr.mxu0 0.0
        %387 = vmatpush1.msra.mxu0 0.0
        %388 = vmatprep.subr.mxu0 0.0
        %389 = vmatpush1.msra.mxu0 0.0
        %390 = vmatprep.subr.mxu0 0.0
        %391 = vmatpush1.msra.mxu0 0.0
        %392 = vmatprep.subr.mxu0 0.0
        %393 = vmatpush1.msra.mxu0 0.0
        %394 = vmatprep.subr.mxu0 0.0
        %395 = vmatpush1.msra.mxu0 0.0
        %396 = vmatprep.subr.mxu0 0.0
        %397 = vmatpush1.msra.mxu0 0.0
        %398 = vmatprep.subr.mxu0 0.0
        %399 = vmatpush1.msra.mxu0 %v292
        %400 = vmatprep.subr.mxu0 0.0
        %401 = vmatpush2.msra.mxu0 0.0
        %402 = vmatprep.subr.mxu0 0.0
        %403 = vmatpush2.msra.mxu0 0.0
        %404 = vmatprep.subr.mxu0 0.0
        %405 = vmatpush2.msra.mxu0 0.0
        %406 = vmatprep.subr.mxu0 0.0
        %407 = vmatpush2.msra.mxu0 0.0
        %408 = vmatprep.subr.mxu0 0.0
        %409 = vmatpush2.msra.mxu0 0.0
        %410 = vmatprep.subr.mxu0 0.0
        %411 = vmatpush2.msra.mxu0 0.0
        %412 = vmatprep.subr.mxu0 0.0
        %413 = vmatpush2.msra.mxu0 0.0
        %414 = vmatprep.subr.mxu0 0.0
        %415 = vmatpush2.msra.mxu0 0.0
        %416 = vmatprep.subr.mxu0 0.0
        %417 = vmatpush2.msra.mxu0 0.0
        %418 = vmatprep.subr.mxu0 0.0
        %419 = vmatpush2.msra.mxu0 0.0
        %420 = vmatprep.subr.mxu0 0.0
        %421 = vmatpush2.msra.mxu0 0.0
        %422 = vmatprep.subr.mxu0 0.0
        %423 = vmatpush2.msra.mxu0 0.0
        %424 = vmatprep.subr.mxu0 0.0
        %425 = vmatpush2.msra.mxu0 0.0
        %426 = vmatprep.subr.mxu0 0.0
        %427 = vmatpush2.msra.mxu0 0.0
        %428 = vmatprep.subr.mxu0 0.0
        %429 = vmatpush2.msra.mxu0 0.0
        %430 = vmatprep.subr.mxu0 0.0
        %431 = vmatpush2.msra.mxu0 0.0
        %432 = vmatprep.mubr.f32.mxu0 0.0
        %433 = vmatmul.mubr.f32.gmra.mxu0 %v366
        %v434 = vpop.f32.mrf.mxu0
        %v435 = vadd.f32 0.0, %v434
        %v436 = vpop.f32.mrf.mxu0
        %437 = vdwg.mxu0
        %v438 = vld [vmem:[%s4] sm:$0xff]
        %v439 = vld [vmem:[%s4 + $0x8] sm:$0xff]
        %v440 = vld [vmem:[%s5] sm:$0xff]
        %v441 = vld [vmem:[%s5 + $0x8] sm:$0xff]
        %vm442 = vcmask 130048
        %v444 = vsel %vm442, %v435, 0
        %446 = vmatprep.subr.mxu0 0.0
        %447 = vmatpush1.msra.mxu0 0.0
        %448 = vmatprep.subr.mxu0 0.0
        %449 = vmatpush1.msra.mxu0 0.0
        %450 = vmatprep.subr.mxu0 0.0
        %451 = vmatpush1.msra.mxu0 0.0
        %452 = vmatprep.subr.mxu0 0.0
        %453 = vmatpush1.msra.mxu0 0.0
        %454 = vmatprep.subr.mxu0 0.0
        %455 = vmatpush1.msra.mxu0 0.0
        %456 = vmatprep.subr.mxu0 0.0
        %457 = vmatpush1.msra.mxu0 0.0
        %458 = vmatprep.subr.mxu0 0.0
        %459 = vmatpush1.msra.mxu0 0.0
        %460 = vmatprep.subr.mxu0 0.0
        %461 = vmatpush1.msra.mxu0 0.0
        %462 = vmatprep.subr.mxu0 0.0
        %463 = vmatpush1.msra.mxu0 0.0
        %464 = vmatprep.subr.mxu0 0.0
        %465 = vmatpush1.msra.mxu0 0.0
        %466 = vmatprep.subr.mxu0 0.0
        %467 = vmatpush1.msra.mxu0 0.0
        %468 = vmatprep.subr.mxu0 0.0
        %469 = vmatpush1.msra.mxu0 0.0
        %470 = vmatprep.subr.mxu0 0.0
        %471 = vmatpush1.msra.mxu0 0.0
        %472 = vmatprep.subr.mxu0 0.0
        %473 = vmatpush1.msra.mxu0 0.0
        %474 = vmatprep.subr.mxu0 0.0
        %475 = vmatpush1.msra.mxu0 %v441
        %476 = vmatprep.subr.mxu0 0.0
        %477 = vmatpush1.msra.mxu0 %v440
        %478 = vmatprep.subr.mxu0 0.0
        %479 = vmatpush2.msra.mxu0 0.0
        %480 = vmatprep.subr.mxu0 0.0
        %481 = vmatpush2.msra.mxu0 0.0
        %482 = vmatprep.subr.mxu0 0.0
        %483 = vmatpush2.msra.mxu0 0.0
        %484 = vmatprep.subr.mxu0 0.0
        %485 = vmatpush2.msra.mxu0 0.0
        %486 = vmatprep.subr.mxu0 0.0
        %487 = vmatpush2.msra.mxu0 0.0
        %488 = vmatprep.subr.mxu0 0.0
        %489 = vmatpush2.msra.mxu0 0.0
        %490 = vmatprep.subr.mxu0 0.0
        %491 = vmatpush2.msra.mxu0 0.0
        %492 = vmatprep.subr.mxu0 0.0
        %493 = vmatpush2.msra.mxu0 0.0
        %494 = vmatprep.subr.mxu0 0.0
        %495 = vmatpush2.msra.mxu0 0.0
        %496 = vmatprep.subr.mxu0 0.0
        %497 = vmatpush2.msra.mxu0 0.0
        %498 = vmatprep.subr.mxu0 0.0
        %499 = vmatpush2.msra.mxu0 0.0
        %500 = vmatprep.subr.mxu0 0.0
        %501 = vmatpush2.msra.mxu0 0.0
        %502 = vmatprep.subr.mxu0 0.0
        %503 = vmatpush2.msra.mxu0 0.0
        %504 = vmatprep.subr.mxu0 0.0
        %505 = vmatpush2.msra.mxu0 0.0
        %506 = vmatprep.subr.mxu0 0.0
        %507 = vmatpush2.msra.mxu0 0.0
        %508 = vmatprep.subr.mxu0 0.0
        %509 = vmatpush2.msra.mxu0 0.0
        %510 = vmatprep.mubr.f32.mxu0 0.0
        %511 = vmatmul.mubr.f32.gmra.mxu0 %v444
        %v512 = vpop.f32.mrf.mxu0
        %v513 = vadd.f32 0.0, %v512
        %v514 = vpop.f32.mrf.mxu0
        %515 = vdwg.mxu0
        %v517 = vsel %vm442, %v361, 0
        %519 = vmatprep.subr.mxu0 0.0
        %520 = vmatpush1.msra.mxu0 0.0
        %521 = vmatprep.subr.mxu0 0.0
        %522 = vmatpush1.msra.mxu0 0.0
        %523 = vmatprep.subr.mxu0 0.0
        %524 = vmatpush1.msra.mxu0 0.0
        %525 = vmatprep.subr.mxu0 0.0
        %526 = vmatpush1.msra.mxu0 0.0
        %527 = vmatprep.subr.mxu0 0.0
        %528 = vmatpush1.msra.mxu0 0.0
        %529 = vmatprep.subr.mxu0 0.0
        %530 = vmatpush1.msra.mxu0 0.0
        %531 = vmatprep.subr.mxu0 0.0
        %532 = vmatpush1.msra.mxu0 0.0
        %533 = vmatprep.subr.mxu0 0.0
        %534 = vmatpush1.msra.mxu0 0.0
        %535 = vmatprep.subr.mxu0 0.0
        %536 = vmatpush1.msra.mxu0 0.0
        %537 = vmatprep.subr.mxu0 0.0
        %538 = vmatpush1.msra.mxu0 0.0
        %539 = vmatprep.subr.mxu0 0.0
        %540 = vmatpush1.msra.mxu0 0.0
        %541 = vmatprep.subr.mxu0 0.0
        %542 = vmatpush1.msra.mxu0 0.0
        %543 = vmatprep.subr.mxu0 0.0
        %544 = vmatpush1.msra.mxu0 0.0
        %545 = vmatprep.subr.mxu0 0.0
        %546 = vmatpush1.msra.mxu0 0.0
        %547 = vmatprep.subr.mxu0 0.0
        %548 = vmatpush1.msra.mxu0 %v439
        %549 = vmatprep.subr.mxu0 0.0
        %550 = vmatpush1.msra.mxu0 %v438
        %551 = vmatprep.subr.mxu0 0.0
        %552 = vmatpush2.msra.mxu0 0.0
        %553 = vmatprep.subr.mxu0 0.0
        %554 = vmatpush2.msra.mxu0 0.0
        %555 = vmatprep.subr.mxu0 0.0
        %556 = vmatpush2.msra.mxu0 0.0
        %557 = vmatprep.subr.mxu0 0.0
        %558 = vmatpush2.msra.mxu0 0.0
        %559 = vmatprep.subr.mxu0 0.0
        %560 = vmatpush2.msra.mxu0 0.0
        %561 = vmatprep.subr.mxu0 0.0
        %562 = vmatpush2.msra.mxu0 0.0
        %563 = vmatprep.subr.mxu0 0.0
        %564 = vmatpush2.msra.mxu0 0.0
        %565 = vmatprep.subr.mxu0 0.0
        %566 = vmatpush2.msra.mxu0 0.0
        %567 = vmatprep.subr.mxu0 0.0
        %568 = vmatpush2.msra.mxu0 0.0
        %569 = vmatprep.subr.mxu0 0.0
        %570 = vmatpush2.msra.mxu0 0.0
        %571 = vmatprep.subr.mxu0 0.0
        %572 = vmatpush2.msra.mxu0 0.0
        %573 = vmatprep.subr.mxu0 0.0
        %574 = vmatpush2.msra.mxu0 0.0
        %575 = vmatprep.subr.mxu0 0.0
        %576 = vmatpush2.msra.mxu0 0.0
        %577 = vmatprep.subr.mxu0 0.0
        %578 = vmatpush2.msra.mxu0 0.0
        %579 = vmatprep.subr.mxu0 0.0
        %580 = vmatpush2.msra.mxu0 0.0
        %581 = vmatprep.subr.mxu0 0.0
        %582 = vmatpush2.msra.mxu0 0.0
        %583 = vmatprep.mubr.f32.mxu0 0.0
        %584 = vmatmul.mubr.f32.gmra.mxu0 %v517
        %v585 = vpop.f32.mrf.mxu0
        %v586 = vadd.f32 %v513, %v585
        %v587 = vpop.f32.mrf.mxu0
        %588 = vdwg.mxu0
        %v589 = vld [vmem:[%s3] sm:$0xff]
        %591 = vset.pattern.permute.xlu0 0
        %592 = vperm.xlu0 %591, %v589
        %v593 = vpop.permute.xlu0 %592
        %v595 = vadd.f32 %v586, %v593
        %vm596 = vcmask 261120
        %597 = vst.msk [vmem:[%s283] sm:$0xff] %vm596, %v595
        %s598 = sand.u32 %s178, 1
        %s599 = scalar_lea.sflag [#allocation4], %s598
        %s600 = sand.u32 %s178, 1
        %s601 = smul.addr %s600, 8
        %s602 = scalar_lea.vmem [#allocation5], %s601
        // Predicated region
        $region49: #{tpu_custom_call.1} parent=43 // pred_check
          %p603 = pneg %p188
        $region50: #{tpu_custom_call.1} parent=43 // pred_check_branch
          %605 = sbr.rel (%p603) target = $region52
        $region51: #{tpu_custom_call.1} parent=43 // pred_region
          %s607 = ssub.s32 128, 128
          %608 = vsyncadd %s599, %s607
          %s609 = sadd.s32 %s28, %s27
          %s610 = smul.addr %s609, 128
          %s611 = scalar_lea.hbm %s6, %s610
          %s613 = sshll.u32 %s602, 4
          %s614 = int_to_ptr.vmem [resolvable:$true] %s613
          %616 = dma.vmem_to_hbm [thread:$0]  %s614, 128, %s611, %s599
        $region52: #{tpu_custom_call.1} parent=43 // pred_fallthru
          _
      $region44: #{tpu_custom_call.1} parent=5 // pred_fallthru
        _
      %p617 = scmp.le.s32.totalorder 2, %s18
      // Predicated region
      $region53: #{tpu_custom_call.1} parent=5 // pred_check
        %p618 = pneg %p617
      $region54: #{tpu_custom_call.1} parent=5 // pred_check_branch
        %620 = sbr.rel (%p618) target = $region56
      $region55: #{tpu_custom_call.1} parent=5 // pred_region
        %s621 = ssub.s32 %s18, 2
        // Predicated region
        $region57: #{tpu_custom_call.1} parent=55 // pred_check
          %p622 = pneg %p194
        $region58: #{tpu_custom_call.1} parent=55 // pred_check_branch
          %624 = sbr.rel (%p622) target = $region60
        $region59: #{tpu_custom_call.1} parent=55 // pred_region
          %s625 = sand.u32 %s179, 1
          %s626 = scalar_lea.sflag [#allocation4], %s625
          %s627 = sand.u32 %s179, 1
          %s628 = smul.addr %s627, 8
          %s629 = scalar_lea.vmem [#allocation5], %s628
          %630 = dma.done %s626, 128
        $region60: #{tpu_custom_call.1} parent=55 // pred_fallthru
          _
      $region56: #{tpu_custom_call.1} parent=5 // pred_fallthru
        _
    $region6: #{tpu_custom_call.1} parent=1 // loop_footer
      %s22 = sadd.s32 1, %s18
    $region7: #{tpu_custom_call.1} parent=1 // loop_footer_branch
      %17 = sbr.rel target = $region3
    $region8: #{tpu_custom_call.1} parent=1 // loop_exit
      _
    %631 = vsyncpa [#allocation3], 1
    %s632 = scalar_lea.sflag [#allocation3], 1
    %633 = vsyncpa %s632, 1
    %634 = vsyncpa [#allocation4], 1
    %s635 = scalar_lea.sflag [#allocation4], 1
    %636 = vsyncpa %s635, 1

</llo_original>
